<compile_context>
chip_gen: v7x
topology: tpu7x:2x2x1
jax: 0.10.0
libtpu: 0.0.40
codegen_flags: <defaults>
</compile_context>

<pallas_src>
import functools

import jax
import jax.numpy as jnp
from jax.experimental import pallas as pl
from jax.experimental.pallas import tpu as pltpu


# ------------------------------ fused kernel --------------------------------
def fused_vit_kernel(tok_ref, w_pe_ref, w_cls_ref, b_cls_ref, o_ref, *,
                     batch, num_patches):
    """Fused forward: patch embed -> flatten (as a value) -> classification.

    tok_ref   : (P*B, Kp)  bf16 patch-major tokens; lane `patch_dim` == 1.0
    w_pe_ref  : (Kp, H)    bf16 padded patch-embed weight; row `patch_dim` = b_pe
    w_cls_ref : (P*H, Cp)  bf16 pre-transposed, class-padded classifier weight
    b_cls_ref : (1, Cp)    f32 class-padded bias
    o_ref     : (B, Cp)    f32 lane-dense logits (sliced to `classes` outside)
    """
    # Patch embedding (ViT_base stand-in) on the MXU.  b_pe rides for free on
    # the 1.0 lane folded into the zero K padding — no broadcast-add needed.
    emb = jnp.dot(tok_ref[...], w_pe_ref[...],
                  preferred_element_type=jnp.float32)            # (P*B, H) f32

    # nn.Flatten as a pure value: patch p's (B, H) row block becomes columns
    # [p*H, (p+1)*H) of x_flat.  No VMEM scratch, no masked column stores.
    x_flat = jnp.concatenate(
        [emb[p * batch:(p + 1) * batch, :] for p in range(num_patches)],
        axis=1)                                                  # (B, P*H) f32

    # nn.Linear(base_model_outputs, classes): plain (B,K)@(K,Cp) MXU dot on the
    # pre-transposed weight; K = P*H stays lane-dense, accumulation in f32.
    logits = jnp.dot(x_flat.astype(w_cls_ref.dtype), w_cls_ref[...],
                     preferred_element_type=jnp.float32) + b_cls_ref[...]
    o_ref[...] = logits                                          # lane-dense store


def fused_custom_vit(tokens_pm, w_pe_pad, wt_cls, b_cls_pad, *,
                     batch, num_patches, classes_pad):
    kernel = functools.partial(
        fused_vit_kernel, batch=batch, num_patches=num_patches)
    vmem_spec = pl.BlockSpec(memory_space=pltpu.MemorySpace.VMEM)
    return pl.pallas_call(
        kernel,
        out_shape=jax.ShapeDtypeStruct((batch, classes_pad), jnp.float32),
        in_specs=[vmem_spec] * 4,
        out_specs=vmem_spec,
    )(tokens_pm, w_pe_pad, wt_cls, b_cls_pad)


# ------------------------------- JAX glue ------------------------------------
def extract_patches_pmajor(x, patch, patch_dim, k_pad):
    """NCHW image -> patch-major (P*B, k_pad) tokens; lane `patch_dim` = 1.0."""
    B, C, H, W = x.shape
    ph, pw = H // patch, W // patch
    t = x.reshape(B, C, ph, patch, pw, patch)           # B,C,ph,p1,pw,p2
    t = jnp.transpose(t, (2, 4, 0, 1, 3, 5))            # ph,pw,B,C,p1,p2
    t = t.reshape(ph * pw * B, C * patch * patch)       # (P*B, patch_dim)
    t = jnp.pad(t, ((0, 0), (0, k_pad - patch_dim)))    # lane-dense K padding
    return t.at[:, patch_dim].set(1.0)                  # bias lane (b_pe fold)


@functools.partial(jax.jit, static_argnames=("model_name", "patch"))
def custom_vit_forward(x, params, model_name="FFVT", patch=4):
    B, C, H, W = x.shape
    patch_dim, hidden = params["w_pe"].shape
    classes = params["w_cls"].shape[0]
    num_patches = (H // patch) * (W // patch)
    base_k = num_patches * hidden
    k_pad = ((patch_dim + 1 + 127) // 128) * 128         # +1 lane for b_pe fold
    c_pad = ((classes + 127) // 128) * 128                # lane-dense output

    # Patch-major padded tokens with the 1.0 bias lane.
    tokens_pm = extract_patches_pmajor(x, patch, patch_dim, k_pad)   # (P*B, Kp)

    # Patch-embed weight padded to Kp, with b_pe folded into row `patch_dim`.
    w_pe_pad = jnp.zeros((k_pad, hidden), jnp.float32)
    w_pe_pad = w_pe_pad.at[:patch_dim, :].set(params["w_pe"])
    w_pe_pad = w_pe_pad.at[patch_dim, :].set(params["b_pe"].reshape(hidden))

    # Classifier weight pre-transposed to (K, Cp) and class-padded; bias padded.
    wt_cls = jnp.zeros((base_k, c_pad), jnp.float32)
    wt_cls = wt_cls.at[:, :classes].set(params["w_cls"].T)
    b_cls_pad = jnp.zeros((1, c_pad), jnp.float32)
    b_cls_pad = b_cls_pad.at[:, :classes].set(params["b_cls"])

    # Original module branches on model_name ('FFVT' -> ViT_base(x)[0], else
    # ViT_base(x)); the stand-in yields the same embedding either way, so both
    # branches reach the same fused kernel.
    del model_name

    logits_full = fused_custom_vit(
        tokens_pm.astype(jnp.bfloat16),      # bf16 MXU inputs, f32 accumulation
        w_pe_pad.astype(jnp.bfloat16),
        wt_cls.astype(jnp.bfloat16),
        b_cls_pad,
        batch=B, num_patches=num_patches, classes_pad=c_pad)
    return logits_full[:, :classes]           # slice lane padding back off


# --------------------------------- main --------------------------------------
if __name__ == "__main__":
    classes = 150
    B, C, H, W = 2, 4, 16, 16          # small NCHW input
    patch = 4
    hidden = 32
    num_patches = (H // patch) * (W // patch)            # 16
    patch_dim = C * patch * patch                        # 64
    base_model_outputs = num_patches * hidden            # 512

    key = jax.random.PRNGKey(0)
    k_x, k_wpe, k_bpe, k_wcls, k_bcls = jax.random.split(key, 5)

    x = jax.random.normal(k_x, (B, C, H, W), dtype=jnp.float32)

    params = {
        # patch-embed stand-in weights
        "w_pe": 0.02 * jax.random.normal(k_wpe, (patch_dim, hidden), jnp.float32),
        "b_pe": 0.01 * jax.random.normal(k_bpe, (1, hidden), jnp.float32),
        # ClassificationHead nn.Linear(base_model_outputs, classes):
        # weight (classes, base_model_outputs), bias (1, classes)
        "w_cls": 0.02 * jax.random.normal(
            k_wcls, (classes, base_model_outputs), jnp.float32),
        "b_cls": 0.01 * jax.random.normal(k_bcls, (1, classes), jnp.float32),
    }

    logits = custom_vit_forward(x, params, model_name="FFVT", patch=patch)
    logits = jax.block_until_ready(logits)

    assert logits.shape == (B, classes), logits.shape
    assert logits.dtype == jnp.float32

    # plain-JAX reference (b-major, matching the PyTorch module semantics),
    # computed from the same bf16-rounded inputs the kernel feeds the MXU so
    # the comparison isolates kernel correctness from the bf16 quantization.
    bf = lambda a: a.astype(jnp.bfloat16).astype(jnp.float32)
    xb = bf(x)
    t = xb.reshape(B, C, H // patch, patch, W // patch, patch)
    t = jnp.transpose(t, (0, 2, 4, 1, 3, 5)).reshape(B, num_patches, patch_dim)
    emb_ref = (t.reshape(B * num_patches, patch_dim) @ bf(params["w_pe"])
               + bf(params["b_pe"]))
    x1_ref = emb_ref.reshape(B, num_patches * hidden)                 # nn.Flatten
    ref = bf(x1_ref) @ bf(params["w_cls"]).T + params["b_cls"]        # nn.Linear
    err = float(jnp.max(jnp.abs(logits - ref)))
    assert jnp.allclose(logits, ref, atol=2e-3, rtol=2e-3), err

    print("KERNEL_OK")
</pallas_src>

<mosaic_0001>
module attributes {stable_mosaic.version = 11 : i64} {
  func.func @fused_vit_kernel(%arg0: memref<32x128xbf16, #tpu.memory_space<vmem>>, %arg1: memref<128x32xbf16, #tpu.memory_space<vmem>>, %arg2: memref<512x256xbf16, #tpu.memory_space<vmem>>, %arg3: memref<1x256xf32, #tpu.memory_space<vmem>>, %arg4: memref<2x256xf32, #tpu.memory_space<vmem>>) attributes {dimension_semantics = [], scalar_prefetch = 0 : i64, scratch_operands = 0 : i64, tpu.core_type = #tpu.core_type<tc>} {
    %c0 = arith.constant 0 : index
    %c0_0 = arith.constant 0 : index
    %0 = vector.load %arg0[%c0, %c0_0] : memref<32x128xbf16, #tpu.memory_space<vmem>>, vector<32x128xbf16>
    %c0_1 = arith.constant 0 : index
    %c0_2 = arith.constant 0 : index
    %1 = vector.load %arg1[%c0_1, %c0_2] : memref<128x32xbf16, #tpu.memory_space<vmem>>, vector<128x32xbf16>
    %cst = arith.constant dense<0.000000e+00> : vector<32x32xf32>
    %2 = tpu.matmul %0, %1, %cst {dimension_numbers = #tpu.dot_dimension_numbers<[1], [0], [0], [1], [0, 0, 1, 1], [], []>} : vector<32x128xbf16>, vector<128x32xbf16>, vector<32x32xf32> -> vector<32x32xf32>
    %3 = vector.extract_strided_slice %2 {offsets = [0, 0], sizes = [2, 32], strides = [1, 1]} : vector<32x32xf32> to vector<2x32xf32>
    %4 = vector.extract_strided_slice %2 {offsets = [2, 0], sizes = [2, 32], strides = [1, 1]} : vector<32x32xf32> to vector<2x32xf32>
    %5 = vector.extract_strided_slice %2 {offsets = [4, 0], sizes = [2, 32], strides = [1, 1]} : vector<32x32xf32> to vector<2x32xf32>
    %6 = vector.extract_strided_slice %2 {offsets = [6, 0], sizes = [2, 32], strides = [1, 1]} : vector<32x32xf32> to vector<2x32xf32>
    %7 = vector.extract_strided_slice %2 {offsets = [8, 0], sizes = [2, 32], strides = [1, 1]} : vector<32x32xf32> to vector<2x32xf32>
    %8 = vector.extract_strided_slice %2 {offsets = [10, 0], sizes = [2, 32], strides = [1, 1]} : vector<32x32xf32> to vector<2x32xf32>
    %9 = vector.extract_strided_slice %2 {offsets = [12, 0], sizes = [2, 32], strides = [1, 1]} : vector<32x32xf32> to vector<2x32xf32>
    %10 = vector.extract_strided_slice %2 {offsets = [14, 0], sizes = [2, 32], strides = [1, 1]} : vector<32x32xf32> to vector<2x32xf32>
    %11 = vector.extract_strided_slice %2 {offsets = [16, 0], sizes = [2, 32], strides = [1, 1]} : vector<32x32xf32> to vector<2x32xf32>
    %12 = vector.extract_strided_slice %2 {offsets = [18, 0], sizes = [2, 32], strides = [1, 1]} : vector<32x32xf32> to vector<2x32xf32>
    %13 = vector.extract_strided_slice %2 {offsets = [20, 0], sizes = [2, 32], strides = [1, 1]} : vector<32x32xf32> to vector<2x32xf32>
    %14 = vector.extract_strided_slice %2 {offsets = [22, 0], sizes = [2, 32], strides = [1, 1]} : vector<32x32xf32> to vector<2x32xf32>
    %15 = vector.extract_strided_slice %2 {offsets = [24, 0], sizes = [2, 32], strides = [1, 1]} : vector<32x32xf32> to vector<2x32xf32>
    %16 = vector.extract_strided_slice %2 {offsets = [26, 0], sizes = [2, 32], strides = [1, 1]} : vector<32x32xf32> to vector<2x32xf32>
    %17 = vector.extract_strided_slice %2 {offsets = [28, 0], sizes = [2, 32], strides = [1, 1]} : vector<32x32xf32> to vector<2x32xf32>
    %18 = vector.extract_strided_slice %2 {offsets = [30, 0], sizes = [2, 32], strides = [1, 1]} : vector<32x32xf32> to vector<2x32xf32>
    %19 = tpu.concatenate %3, %4, %5, %6, %7, %8, %9, %10, %11, %12, %13, %14, %15, %16, %17, %18 in 1 : vector<2x32xf32>, vector<2x32xf32>, vector<2x32xf32>, vector<2x32xf32>, vector<2x32xf32>, vector<2x32xf32>, vector<2x32xf32>, vector<2x32xf32>, vector<2x32xf32>, vector<2x32xf32>, vector<2x32xf32>, vector<2x32xf32>, vector<2x32xf32>, vector<2x32xf32>, vector<2x32xf32>, vector<2x32xf32> -> vector<2x512xf32>
    %20 = arith.truncf %19 : vector<2x512xf32> to vector<2x512xbf16>
    %c0_3 = arith.constant 0 : index
    %c0_4 = arith.constant 0 : index
    %21 = vector.load %arg2[%c0_3, %c0_4] : memref<512x256xbf16, #tpu.memory_space<vmem>>, vector<512x256xbf16>
    %cst_5 = arith.constant dense<0.000000e+00> : vector<2x256xf32>
    %22 = tpu.matmul %20, %21, %cst_5 {dimension_numbers = #tpu.dot_dimension_numbers<[1], [0], [0], [1], [0, 0, 1, 1], [], []>} : vector<2x512xbf16>, vector<512x256xbf16>, vector<2x256xf32> -> vector<2x256xf32>
    %c0_6 = arith.constant 0 : index
    %c0_7 = arith.constant 0 : index
    %23 = vector.load %arg3[%c0_6, %c0_7] : memref<1x256xf32, #tpu.memory_space<vmem>>, vector<1x256xf32>
    %24 = vector.broadcast %23 : vector<1x256xf32> to vector<2x256xf32>
    %25 = arith.addf %22, %24 : vector<2x256xf32>
    %c0_8 = arith.constant 0 : index
    %c0_9 = arith.constant 0 : index
    %26 = vector.load %arg4[%c0_8, %c0_9] : memref<2x256xf32, #tpu.memory_space<vmem>>, vector<2x256xf32>
    tpu.vector_store %arg4[%c0_8, %c0_9], %25 {strides = array<i32>} : memref<2x256xf32, #tpu.memory_space<vmem>>, vector<2x256xf32>,
    return
  }
}

</mosaic_0001>

<llo_original>
// kernel: custom_vit_forward.1
$region0: #{custom_vit_forward.1}
  #allocation0 [shape = 'u32[]', space=smem, size = 0x4, offset = 0x4, fixed_abs, tag = 'smem constant byte address 0x4 - core index']
  #allocation1 [shape = 'u32[144,128]{1,0:T(1,128)}', space=vmem, size = 0x12000, scoped, tag = 'internal scratch']
  %s0 = inlined_call_operand.vmem [shape: bf16[32,128], index: 0, kind: input, shape index: {}]
  %s1 = inlined_call_operand.vmem [shape: bf16[128,32], index: 1, kind: input, shape index: {}]
  %s2 = inlined_call_operand.vmem [shape: bf16[512,256], index: 2, kind: input, shape index: {}]
  %s3 = inlined_call_operand.vmem [shape: f32[1,256], index: 3, kind: input, shape index: {}]
  %s4 = inlined_call_operand.hbm [shape: f32[2,256], index: 4, kind: output, shape index: {}]
  %s5 = sld [smem:[#allocation0]]
  $region26: #{custom_vit_forward.1} parent=0
    _
  %s7 = ssub.s32 1, %s5
  %s8 = scalar_select 0, %s7, %s5
  $region1: #{custom_vit_forward.1} parent=0
    #allocation2 [shape = 'u8[2048]{0}', space=vmem, size = 0x800, scoped, tag = 'output window, operand 0, single buffered']
    #allocation3 [shape = 's32[1]{0}', space=sflag, size = 0x4, scoped, tag = 'scoped memory for custom_vit_forward.1']
    %9 = vsyncpa [#allocation3], 0
    // Predicated region
    $region2: #{custom_vit_forward.1} parent=1 // pred_check
      _
    $region3: #{custom_vit_forward.1} parent=1 // pred_check_branch
      %11 = sbr.rel (0) target = $region5
    $region4: #{custom_vit_forward.1} parent=1 // pred_region
      _
    $region5: #{custom_vit_forward.1} parent=1 // pred_fallthru
      _
    // Predicated region
    $region6: #{custom_vit_forward.1} parent=1 // pred_check
      _
    $region7: #{custom_vit_forward.1} parent=1 // pred_check_branch
      %13 = sbr.rel (0) target = $region9
    $region8: #{custom_vit_forward.1} parent=1 // pred_region
      _
    $region9: #{custom_vit_forward.1} parent=1 // pred_fallthru
      _
    // Predicated region
    $region10: #{custom_vit_forward.1} parent=1 // pred_check
      _
    $region11: #{custom_vit_forward.1} parent=1 // pred_check_branch
      %15 = sbr.rel (0) target = $region13
    $region12: #{custom_vit_forward.1} parent=1 // pred_region
      _
    $region13: #{custom_vit_forward.1} parent=1 // pred_fallthru
      _
    // Predicated region
    $region14: #{custom_vit_forward.1} parent=1 // pred_check
      _
    $region15: #{custom_vit_forward.1} parent=1 // pred_check_branch
      %17 = sbr.rel (0) target = $region17
    $region16: #{custom_vit_forward.1} parent=1 // pred_region
      _
    $region17: #{custom_vit_forward.1} parent=1 // pred_fallthru
      _
    %v19 = vld [vmem:[%s0] sm:$0xf]
    %v20 = vld [vmem:[%s0 + $0x4] sm:$0xf]
    %v21 = vld [vmem:[%s0 + $0x8] sm:$0xf]
    %v22 = vld [vmem:[%s0 + $0xc] sm:$0xf]
    %v23 = vld [vmem:[%s1] sm:$0xf]
    %v24 = vld [vmem:[%s1 + $0x4] sm:$0xf]
    %v25 = vld [vmem:[%s1 + $0x8] sm:$0xf]
    %v26 = vld [vmem:[%s1 + $0xc] sm:$0xf]
    %v27 = vld [vmem:[%s1 + $0x10] sm:$0xf]
    %v28 = vld [vmem:[%s1 + $0x14] sm:$0xf]
    %v29 = vld [vmem:[%s1 + $0x18] sm:$0xf]
    %v30 = vld [vmem:[%s1 + $0x1c] sm:$0xf]
    %v31 = vld [vmem:[%s1 + $0x20] sm:$0xf]
    %v32 = vld [vmem:[%s1 + $0x24] sm:$0xf]
    %v33 = vld [vmem:[%s1 + $0x28] sm:$0xf]
    %v34 = vld [vmem:[%s1 + $0x2c] sm:$0xf]
    %v35 = vld [vmem:[%s1 + $0x30] sm:$0xf]
    %v36 = vld [vmem:[%s1 + $0x34] sm:$0xf]
    %v37 = vld [vmem:[%s1 + $0x38] sm:$0xf]
    %v38 = vld [vmem:[%s1 + $0x3c] sm:$0xf]
    %v43 = vunpack.c.l.b16 %v19
    %v44 = vunpack.c.l.b16 %v20
    %v45 = vunpack.c.l.b16 %v21
    %v46 = vunpack.c.l.b16 %v22
    %v47 = vpack.c.b16 %v44, %v43
    %v48 = vpack.c.b16 %v46, %v45
    %v67 = vunpack.c.l.b16 %v23
    %v68 = vunpack.c.l.b16 %v24
    %v69 = vunpack.c.l.b16 %v25
    %v70 = vunpack.c.l.b16 %v26
    %v71 = vunpack.c.l.b16 %v27
    %v72 = vunpack.c.l.b16 %v28
    %v73 = vunpack.c.l.b16 %v29
    %v74 = vunpack.c.l.b16 %v30
    %v75 = vunpack.c.l.b16 %v31
    %v76 = vunpack.c.l.b16 %v32
    %v77 = vunpack.c.l.b16 %v33
    %v78 = vunpack.c.l.b16 %v34
    %v79 = vunpack.c.l.b16 %v35
    %v80 = vunpack.c.l.b16 %v36
    %v81 = vunpack.c.l.b16 %v37
    %v82 = vunpack.c.l.b16 %v38
    %v83 = vpack.c.b16 %v68, %v67
    %v84 = vpack.c.b16 %v70, %v69
    %v85 = vpack.c.b16 %v72, %v71
    %v86 = vpack.c.b16 %v74, %v73
    %v87 = vpack.c.b16 %v76, %v75
    %v88 = vpack.c.b16 %v78, %v77
    %v89 = vpack.c.b16 %v80, %v79
    %v90 = vpack.c.b16 %v82, %v81
    %99 = vmatprep.subr.bf16.mxu0 0
    %100 = vmatpush1.bf16.msra.mxu0 %v83
    %101 = vmatprep.subr.bf16.mxu0 0
    %102 = vmatpush1.bf16.msra.mxu0 %v84
    %103 = vmatprep.subr.bf16.mxu0 0
    %104 = vmatpush1.bf16.msra.mxu0 %v85
    %105 = vmatprep.subr.bf16.mxu0 0
    %106 = vmatpush1.bf16.msra.mxu0 %v86
    %107 = vmatprep.subr.bf16.mxu0 0
    %108 = vmatpush1.bf16.msra.mxu0 %v87
    %109 = vmatprep.subr.bf16.mxu0 0
    %110 = vmatpush1.bf16.msra.mxu0 %v88
    %111 = vmatprep.subr.bf16.mxu0 0
    %112 = vmatpush1.bf16.msra.mxu0 %v89
    %113 = vmatprep.subr.bf16.mxu0 0
    %114 = vmatpush1.bf16.msra.mxu0 %v90
    %115 = vmatprep.subr.bf16.mxu0 0
    %116 = vmatpush1.bf16.msra.mxu0 0
    %117 = vmatprep.subr.bf16.mxu0 0
    %118 = vmatpush1.bf16.msra.mxu0 0
    %119 = vmatprep.subr.bf16.mxu0 0
    %120 = vmatpush1.bf16.msra.mxu0 0
    %121 = vmatprep.subr.bf16.mxu0 0
    %122 = vmatpush1.bf16.msra.mxu0 0
    %123 = vmatprep.subr.bf16.mxu0 0
    %124 = vmatpush1.bf16.msra.mxu0 0
    %125 = vmatprep.subr.bf16.mxu0 0
    %126 = vmatpush1.bf16.msra.mxu0 0
    %127 = vmatprep.subr.bf16.mxu0 0
    %128 = vmatpush1.bf16.msra.mxu0 0
    %129 = vmatprep.subr.bf16.mxu0 0
    %130 = vmatpush1.bf16.msra.mxu0 0
    %131 = vmatprep.mubr.bf16.mxu0 0
    %132 = vmatmul.mubr.bf16.gmra.mrb[0].mxu0 %v47
    %v133 = vpop.f32.mrb[0].mxu0
    %v134 = vadd.f32 0.0, %v133
    %v135 = vpop.f32.mrb[0].mxu0
    %v136 = vpop.f32.mrb[0].mxu0
    %v137 = vadd.f32 0.0, %v136
    %v138 = vpop.f32.mrb[0].mxu0
    %139 = vmatprep.mubr.bf16.mxu0 0
    %140 = vmatmul.mubr.bf16.gmra.mrb[0].mxu0 %v48
    %v141 = vpop.f32.mrb[0].mxu0
    %v142 = vadd.f32 0.0, %v141
    %v143 = vpop.f32.mrb[0].mxu0
    %v144 = vpop.f32.mrb[0].mxu0
    %v145 = vadd.f32 0.0, %v144
    %v146 = vpop.f32.mrb[0].mxu0
    %147 = vdwg.mxu0
    %v149 = vrot.slane %v134, 2
    %150 = vrot.lane.b32.xlu0 %v149, 32
    %v151 = vpop.permute.xlu0 %150
    %v153 = vrot.slane %v134, 4
    %154 = vrot.lane.b32.xlu0 %v153, 64
    %v155 = vpop.permute.xlu0 %154
    %v157 = vrot.slane %v134, 6
    %158 = vrot.lane.b32.xlu0 %v157, 96
    %v159 = vpop.permute.xlu0 %158
    %v162 = vrot.slane %v137, 2
    %163 = vrot.lane.b32.xlu0 %v162, 32
    %v164 = vpop.permute.xlu0 %163
    %v166 = vrot.slane %v137, 4
    %167 = vrot.lane.b32.xlu0 %v166, 64
    %v168 = vpop.permute.xlu0 %167
    %v170 = vrot.slane %v137, 6
    %171 = vrot.lane.b32.xlu0 %v170, 96
    %v172 = vpop.permute.xlu0 %171
    %v175 = vrot.slane %v142, 2
    %176 = vrot.lane.b32.xlu0 %v175, 32
    %v177 = vpop.permute.xlu0 %176
    %v179 = vrot.slane %v142, 4
    %180 = vrot.lane.b32.xlu0 %v179, 64
    %v181 = vpop.permute.xlu0 %180
    %v183 = vrot.slane %v142, 6
    %184 = vrot.lane.b32.xlu0 %v183, 96
    %v185 = vpop.permute.xlu0 %184
    %v188 = vrot.slane %v145, 2
    %189 = vrot.lane.b32.xlu0 %v188, 32
    %v190 = vpop.permute.xlu0 %189
    %v192 = vrot.slane %v145, 4
    %193 = vrot.lane.b32.xlu0 %v192, 64
    %v194 = vpop.permute.xlu0 %193
    %v196 = vrot.slane %v145, 6
    %197 = vrot.lane.b32.xlu0 %v196, 96
    %v198 = vpop.permute.xlu0 %197
    %vm200 = vcmask 261120
    %v201 = vsel %vm200, %v134, %v151
    %vm202 = vcmask 523264
    %v203 = vsel %vm202, %v201, %v155
    %vm204 = vcmask 785408
    %v205 = vsel %vm204, %v203, %v159
    %v206 = vsel %vm200, %v137, %v164
    %v207 = vsel %vm202, %v206, %v168
    %v208 = vsel %vm204, %v207, %v172
    %v209 = vsel %vm200, %v142, %v177
    %v210 = vsel %vm202, %v209, %v181
    %v211 = vsel %vm204, %v210, %v185
    %v212 = vsel %vm200, %v145, %v190
    %v213 = vsel %vm202, %v212, %v194
    %v214 = vsel %vm204, %v213, %v198
    %v215 = vpack.c.bf16 %v205, %v205
    %v216 = vpack.c.bf16 %v208, %v208
    %v217 = vpack.c.bf16 %v211, %v211
    %v218 = vpack.c.bf16 %v214, %v214
    %v219 = vld [vmem:[%s2] sm:$0xff]
    %v220 = vld [vmem:[%s2 + $0x8] sm:$0xff]
    %v221 = vld [vmem:[%s2 + $0x10] sm:$0xff]
    %v222 = vld [vmem:[%s2 + $0x18] sm:$0xff]
    %v223 = vld [vmem:[%s2 + $0x20] sm:$0xff]
    %v224 = vld [vmem:[%s2 + $0x28] sm:$0xff]
    %v225 = vld [vmem:[%s2 + $0x30] sm:$0xff]
    %v226 = vld [vmem:[%s2 + $0x38] sm:$0xff]
    %v227 = vld [vmem:[%s2 + $0x40] sm:$0xff]
    %v228 = vld [vmem:[%s2 + $0x48] sm:$0xff]
    %v229 = vld [vmem:[%s2 + $0x50] sm:$0xff]
    %v230 = vld [vmem:[%s2 + $0x58] sm:$0xff]
    %v231 = vld [vmem:[%s2 + $0x60] sm:$0xff]
    %v232 = vld [vmem:[%s2 + $0x68] sm:$0xff]
    %v233 = vld [vmem:[%s2 + $0x70] sm:$0xff]
    %v234 = vld [vmem:[%s2 + $0x78] sm:$0xff]
    %v235 = vld [vmem:[%s2 + $0x80] sm:$0xff]
    %v236 = vld [vmem:[%s2 + $0x88] sm:$0xff]
    %v237 = vld [vmem:[%s2 + $0x90] sm:$0xff]
    %v238 = vld [vmem:[%s2 + $0x98] sm:$0xff]
    %v239 = vld [vmem:[%s2 + $0xa0] sm:$0xff]
    %v240 = vld [vmem:[%s2 + $0xa8] sm:$0xff]
    %v241 = vld [vmem:[%s2 + $0xb0] sm:$0xff]
    %v242 = vld [vmem:[%s2 + $0xb8] sm:$0xff]
    %v243 = vld [vmem:[%s2 + $0xc0] sm:$0xff]
    %v244 = vld [vmem:[%s2 + $0xc8] sm:$0xff]
    %v245 = vld [vmem:[%s2 + $0xd0] sm:$0xff]
    %v246 = vld [vmem:[%s2 + $0xd8] sm:$0xff]
    %v247 = vld [vmem:[%s2 + $0xe0] sm:$0xff]
    %v248 = vld [vmem:[%s2 + $0xe8] sm:$0xff]
    %v249 = vld [vmem:[%s2 + $0xf0] sm:$0xff]
    %v250 = vld [vmem:[%s2 + $0xf8] sm:$0xff]
    %v251 = vld [vmem:[%s2 + $0x100] sm:$0xff]
    %v252 = vld [vmem:[%s2 + $0x108] sm:$0xff]
    %v253 = vld [vmem:[%s2 + $0x110] sm:$0xff]
    %v254 = vld [vmem:[%s2 + $0x118] sm:$0xff]
    %v255 = vld [vmem:[%s2 + $0x120] sm:$0xff]
    %v256 = vld [vmem:[%s2 + $0x128] sm:$0xff]
    %v257 = vld [vmem:[%s2 + $0x130] sm:$0xff]
    %v258 = vld [vmem:[%s2 + $0x138] sm:$0xff]
    %v259 = vld [vmem:[%s2 + $0x140] sm:$0xff]
    %v260 = vld [vmem:[%s2 + $0x148] sm:$0xff]
    %v261 = vld [vmem:[%s2 + $0x150] sm:$0xff]
    %v262 = vld [vmem:[%s2 + $0x158] sm:$0xff]
    %v263 = vld [vmem:[%s2 + $0x160] sm:$0xff]
    %v264 = vld [vmem:[%s2 + $0x168] sm:$0xff]
    %v265 = vld [vmem:[%s2 + $0x170] sm:$0xff]
    %v266 = vld [vmem:[%s2 + $0x178] sm:$0xff]
    %v267 = vld [vmem:[%s2 + $0x180] sm:$0xff]
    %v268 = vld [vmem:[%s2 + $0x188] sm:$0xff]
    %v269 = vld [vmem:[%s2 + $0x190] sm:$0xff]
    %v270 = vld [vmem:[%s2 + $0x198] sm:$0xff]
    %v271 = vld [vmem:[%s2 + $0x1a0] sm:$0xff]
    %v272 = vld [vmem:[%s2 + $0x1a8] sm:$0xff]
    %v273 = vld [vmem:[%s2 + $0x1b0] sm:$0xff]
    %v274 = vld [vmem:[%s2 + $0x1b8] sm:$0xff]
    %v275 = vld [vmem:[%s2 + $0x1c0] sm:$0xff]
    %v276 = vld [vmem:[%s2 + $0x1c8] sm:$0xff]
    %v277 = vld [vmem:[%s2 + $0x1d0] sm:$0xff]
    %v278 = vld [vmem:[%s2 + $0x1d8] sm:$0xff]
    %v279 = vld [vmem:[%s2 + $0x1e0] sm:$0xff]
    %v280 = vld [vmem:[%s2 + $0x1e8] sm:$0xff]
    %v281 = vld [vmem:[%s2 + $0x1f0] sm:$0xff]
    %v282 = vld [vmem:[%s2 + $0x1f8] sm:$0xff]
    %v283 = vld [vmem:[%s3] sm:$0x3]
    %v285 = vlaneseq
    %v286 = vshrl.u32 %v285, 7
    %v287 = vsub.s32 0, %v286
    %v288 = vrot.slane %v283, %v287
    %v289 = vlaneseq
    %v290 = vshrl.u32 %v289, 7
    %v291 = vsub.s32 1, %v290
    %v292 = vrot.slane %v283, %v291
    %v359 = vunpack.c.l.b16 %v219
    %v360 = vunpack.c.h.b16 %v219
    %v361 = vunpack.c.l.b16 %v220
    %v362 = vunpack.c.h.b16 %v220
    %v363 = vunpack.c.l.b16 %v221
    %v364 = vunpack.c.h.b16 %v221
    %v365 = vunpack.c.l.b16 %v222
    %v366 = vunpack.c.h.b16 %v222
    %v367 = vunpack.c.l.b16 %v223
    %v368 = vunpack.c.h.b16 %v223
    %v369 = vunpack.c.l.b16 %v224
    %v370 = vunpack.c.h.b16 %v224
    %v371 = vunpack.c.l.b16 %v225
    %v372 = vunpack.c.h.b16 %v225
    %v373 = vunpack.c.l.b16 %v226
    %v374 = vunpack.c.h.b16 %v226
    %v375 = vunpack.c.l.b16 %v227
    %v376 = vunpack.c.h.b16 %v227
    %v377 = vunpack.c.l.b16 %v228
    %v378 = vunpack.c.h.b16 %v228
    %v379 = vunpack.c.l.b16 %v229
    %v380 = vunpack.c.h.b16 %v229
    %v381 = vunpack.c.l.b16 %v230
    %v382 = vunpack.c.h.b16 %v230
    %v383 = vunpack.c.l.b16 %v231
    %v384 = vunpack.c.h.b16 %v231
    %v385 = vunpack.c.l.b16 %v232
    %v386 = vunpack.c.h.b16 %v232
    %v387 = vunpack.c.l.b16 %v233
    %v388 = vunpack.c.h.b16 %v233
    %v389 = vunpack.c.l.b16 %v234
    %v390 = vunpack.c.h.b16 %v234
    %v391 = vunpack.c.l.b16 %v235
    %v392 = vunpack.c.h.b16 %v235
    %v393 = vunpack.c.l.b16 %v236
    %v394 = vunpack.c.h.b16 %v236
    %v395 = vunpack.c.l.b16 %v237
    %v396 = vunpack.c.h.b16 %v237
    %v397 = vunpack.c.l.b16 %v238
    %v398 = vunpack.c.h.b16 %v238
    %v399 = vunpack.c.l.b16 %v239
    %v400 = vunpack.c.h.b16 %v239
    %v401 = vunpack.c.l.b16 %v240
    %v402 = vunpack.c.h.b16 %v240
    %v403 = vunpack.c.l.b16 %v241
    %v404 = vunpack.c.h.b16 %v241
    %v405 = vunpack.c.l.b16 %v242
    %v406 = vunpack.c.h.b16 %v242
    %v407 = vunpack.c.l.b16 %v243
    %v408 = vunpack.c.h.b16 %v243
    %v409 = vunpack.c.l.b16 %v244
    %v410 = vunpack.c.h.b16 %v244
    %v411 = vunpack.c.l.b16 %v245
    %v412 = vunpack.c.h.b16 %v245
    %v413 = vunpack.c.l.b16 %v246
    %v414 = vunpack.c.h.b16 %v246
    %v415 = vunpack.c.l.b16 %v247
    %v416 = vunpack.c.h.b16 %v247
    %v417 = vunpack.c.l.b16 %v248
    %v418 = vunpack.c.h.b16 %v248
    %v419 = vunpack.c.l.b16 %v249
    %v420 = vunpack.c.h.b16 %v249
    %v421 = vunpack.c.l.b16 %v250
    %v422 = vunpack.c.h.b16 %v250
    %v423 = vunpack.c.l.b16 %v251
    %v424 = vunpack.c.h.b16 %v251
    %v425 = vunpack.c.l.b16 %v252
    %v426 = vunpack.c.h.b16 %v252
    %v427 = vunpack.c.l.b16 %v253
    %v428 = vunpack.c.h.b16 %v253
    %v429 = vunpack.c.l.b16 %v254
    %v430 = vunpack.c.h.b16 %v254
    %v431 = vunpack.c.l.b16 %v255
    %v432 = vunpack.c.h.b16 %v255
    %v433 = vunpack.c.l.b16 %v256
    %v434 = vunpack.c.h.b16 %v256
    %v435 = vunpack.c.l.b16 %v257
    %v436 = vunpack.c.h.b16 %v257
    %v437 = vunpack.c.l.b16 %v258
    %v438 = vunpack.c.h.b16 %v258
    %v439 = vunpack.c.l.b16 %v259
    %v440 = vunpack.c.h.b16 %v259
    %v441 = vunpack.c.l.b16 %v260
    %v442 = vunpack.c.h.b16 %v260
    %v443 = vunpack.c.l.b16 %v261
    %v444 = vunpack.c.h.b16 %v261
    %v445 = vunpack.c.l.b16 %v262
    %v446 = vunpack.c.h.b16 %v262
    %v447 = vunpack.c.l.b16 %v263
    %v448 = vunpack.c.h.b16 %v263
    %v449 = vunpack.c.l.b16 %v264
    %v450 = vunpack.c.h.b16 %v264
    %v451 = vunpack.c.l.b16 %v265
    %v452 = vunpack.c.h.b16 %v265
    %v453 = vunpack.c.l.b16 %v266
    %v454 = vunpack.c.h.b16 %v266
    %v455 = vunpack.c.l.b16 %v267
    %v456 = vunpack.c.h.b16 %v267
    %v457 = vunpack.c.l.b16 %v268
    %v458 = vunpack.c.h.b16 %v268
    %v459 = vunpack.c.l.b16 %v269
    %v460 = vunpack.c.h.b16 %v269
    %v461 = vunpack.c.l.b16 %v270
    %v462 = vunpack.c.h.b16 %v270
    %v463 = vunpack.c.l.b16 %v271
    %v464 = vunpack.c.h.b16 %v271
    %v465 = vunpack.c.l.b16 %v272
    %v466 = vunpack.c.h.b16 %v272
    %v467 = vunpack.c.l.b16 %v273
    %v468 = vunpack.c.h.b16 %v273
    %v469 = vunpack.c.l.b16 %v274
    %v470 = vunpack.c.h.b16 %v274
    %v471 = vunpack.c.l.b16 %v275
    %v472 = vunpack.c.h.b16 %v275
    %v473 = vunpack.c.l.b16 %v276
    %v474 = vunpack.c.h.b16 %v276
    %v475 = vunpack.c.l.b16 %v277
    %v476 = vunpack.c.h.b16 %v277
    %v477 = vunpack.c.l.b16 %v278
    %v478 = vunpack.c.h.b16 %v278
    %v479 = vunpack.c.l.b16 %v279
    %v480 = vunpack.c.h.b16 %v279
    %v481 = vunpack.c.l.b16 %v280
    %v482 = vunpack.c.h.b16 %v280
    %v483 = vunpack.c.l.b16 %v281
    %v484 = vunpack.c.h.b16 %v281
    %v485 = vunpack.c.l.b16 %v282
    %v486 = vunpack.c.h.b16 %v282
    %v487 = vpack.c.b16 %v361, %v359
    %v488 = vpack.c.b16 %v362, %v360
    %v489 = vpack.c.b16 %v365, %v363
    %v490 = vpack.c.b16 %v366, %v364
    %v491 = vpack.c.b16 %v369, %v367
    %v492 = vpack.c.b16 %v370, %v368
    %v493 = vpack.c.b16 %v373, %v371
    %v494 = vpack.c.b16 %v374, %v372
    %v495 = vpack.c.b16 %v377, %v375
    %v496 = vpack.c.b16 %v378, %v376
    %v497 = vpack.c.b16 %v381, %v379
    %v498 = vpack.c.b16 %v382, %v380
    %v499 = vpack.c.b16 %v385, %v383
    %v500 = vpack.c.b16 %v386, %v384
    %v501 = vpack.c.b16 %v389, %v387
    %v502 = vpack.c.b16 %v390, %v388
    %v503 = vpack.c.b16 %v393, %v391
    %v504 = vpack.c.b16 %v394, %v392
    %v505 = vpack.c.b16 %v397, %v395
    %v506 = vpack.c.b16 %v398, %v396
    %v507 = vpack.c.b16 %v401, %v399
    %v508 = vpack.c.b16 %v402, %v400
    %v509 = vpack.c.b16 %v405, %v403
    %v510 = vpack.c.b16 %v406, %v404
    %v511 = vpack.c.b16 %v409, %v407
    %v512 = vpack.c.b16 %v410, %v408
    %v513 = vpack.c.b16 %v413, %v411
    %v514 = vpack.c.b16 %v414, %v412
    %v515 = vpack.c.b16 %v417, %v415
    %v516 = vpack.c.b16 %v418, %v416
    %v517 = vpack.c.b16 %v421, %v419
    %v518 = vpack.c.b16 %v422, %v420
    %v519 = vpack.c.b16 %v425, %v423
    %v520 = vpack.c.b16 %v426, %v424
    %v521 = vpack.c.b16 %v429, %v427
    %v522 = vpack.c.b16 %v430, %v428
    %v523 = vpack.c.b16 %v433, %v431
    %v524 = vpack.c.b16 %v434, %v432
    %v525 = vpack.c.b16 %v437, %v435
    %v526 = vpack.c.b16 %v438, %v436
    %v527 = vpack.c.b16 %v441, %v439
    %v528 = vpack.c.b16 %v442, %v440
    %v529 = vpack.c.b16 %v445, %v443
    %v530 = vpack.c.b16 %v446, %v444
    %v531 = vpack.c.b16 %v449, %v447
    %v532 = vpack.c.b16 %v450, %v448
    %v533 = vpack.c.b16 %v453, %v451
    %v534 = vpack.c.b16 %v454, %v452
    %v535 = vpack.c.b16 %v457, %v455
    %v536 = vpack.c.b16 %v458, %v456
    %v537 = vpack.c.b16 %v461, %v459
    %v538 = vpack.c.b16 %v462, %v460
    %v539 = vpack.c.b16 %v465, %v463
    %v540 = vpack.c.b16 %v466, %v464
    %v541 = vpack.c.b16 %v469, %v467
    %v542 = vpack.c.b16 %v470, %v468
    %v543 = vpack.c.b16 %v473, %v471
    %v544 = vpack.c.b16 %v474, %v472
    %v545 = vpack.c.b16 %v477, %v475
    %v546 = vpack.c.b16 %v478, %v476
    %v547 = vpack.c.b16 %v481, %v479
    %v548 = vpack.c.b16 %v482, %v480
    %v549 = vpack.c.b16 %v485, %v483
    %v550 = vpack.c.b16 %v486, %v484
    %615 = vmatprep.subr.bf16.mxu0 %v488
    %616 = vmatpush1.bf16.msra.mxu0 %v487
    %617 = vmatprep.subr.bf16.mxu0 %v490
    %618 = vmatpush1.bf16.msra.mxu0 %v489
    %619 = vmatprep.subr.bf16.mxu0 %v492
    %620 = vmatpush1.bf16.msra.mxu0 %v491
    %621 = vmatprep.subr.bf16.mxu0 %v494
    %622 = vmatpush1.bf16.msra.mxu0 %v493
    %623 = vmatprep.subr.bf16.mxu0 %v496
    %624 = vmatpush1.bf16.msra.mxu0 %v495
    %625 = vmatprep.subr.bf16.mxu0 %v498
    %626 = vmatpush1.bf16.msra.mxu0 %v497
    %627 = vmatprep.subr.bf16.mxu0 %v500
    %628 = vmatpush1.bf16.msra.mxu0 %v499
    %629 = vmatprep.subr.bf16.mxu0 %v502
    %630 = vmatpush1.bf16.msra.mxu0 %v501
    %631 = vmatprep.subr.bf16.mxu0 %v504
    %632 = vmatpush1.bf16.msra.mxu0 %v503
    %633 = vmatprep.subr.bf16.mxu0 %v506
    %634 = vmatpush1.bf16.msra.mxu0 %v505
    %635 = vmatprep.subr.bf16.mxu0 %v508
    %636 = vmatpush1.bf16.msra.mxu0 %v507
    %637 = vmatprep.subr.bf16.mxu0 %v510
    %638 = vmatpush1.bf16.msra.mxu0 %v509
    %639 = vmatprep.subr.bf16.mxu0 %v512
    %640 = vmatpush1.bf16.msra.mxu0 %v511
    %641 = vmatprep.subr.bf16.mxu0 %v514
    %642 = vmatpush1.bf16.msra.mxu0 %v513
    %643 = vmatprep.subr.bf16.mxu0 %v516
    %644 = vmatpush1.bf16.msra.mxu0 %v515
    %645 = vmatprep.subr.bf16.mxu0 %v518
    %646 = vmatpush1.bf16.msra.mxu0 %v517
    %647 = vmatprep.mubr.bf16.mxu0 %v216
    %648 = vmatmul.mubr.bf16.gmra.mrb[0].mxu0 %v215
    %v649 = vpop.f32.mrb[0].mxu0
    %v650 = vadd.f32 %v288, %v649
    %v651 = vpop.f32.mrb[0].mxu0
    %v652 = vadd.f32 %v292, %v651
    %v653 = vpop.f32.mrb[0].mxu0
    %v654 = vpop.f32.mrb[0].mxu0
    %655 = vdwg.mxu0
    %656 = vmatprep.subr.bf16.mxu0 %v520
    %657 = vmatpush1.bf16.msra.mxu0 %v519
    %658 = vmatprep.subr.bf16.mxu0 %v522
    %659 = vmatpush1.bf16.msra.mxu0 %v521
    %660 = vmatprep.subr.bf16.mxu0 %v524
    %661 = vmatpush1.bf16.msra.mxu0 %v523
    %662 = vmatprep.subr.bf16.mxu0 %v526
    %663 = vmatpush1.bf16.msra.mxu0 %v525
    %664 = vmatprep.subr.bf16.mxu0 %v528
    %665 = vmatpush1.bf16.msra.mxu0 %v527
    %666 = vmatprep.subr.bf16.mxu0 %v530
    %667 = vmatpush1.bf16.msra.mxu0 %v529
    %668 = vmatprep.subr.bf16.mxu0 %v532
    %669 = vmatpush1.bf16.msra.mxu0 %v531
    %670 = vmatprep.subr.bf16.mxu0 %v534
    %671 = vmatpush1.bf16.msra.mxu0 %v533
    %672 = vmatprep.subr.bf16.mxu0 %v536
    %673 = vmatpush1.bf16.msra.mxu0 %v535
    %674 = vmatprep.subr.bf16.mxu0 %v538
    %675 = vmatpush1.bf16.msra.mxu0 %v537
    %676 = vmatprep.subr.bf16.mxu0 %v540
    %677 = vmatpush1.bf16.msra.mxu0 %v539
    %678 = vmatprep.subr.bf16.mxu0 %v542
    %679 = vmatpush1.bf16.msra.mxu0 %v541
    %680 = vmatprep.subr.bf16.mxu0 %v544
    %681 = vmatpush1.bf16.msra.mxu0 %v543
    %682 = vmatprep.subr.bf16.mxu0 %v546
    %683 = vmatpush1.bf16.msra.mxu0 %v545
    %684 = vmatprep.subr.bf16.mxu0 %v548
    %685 = vmatpush1.bf16.msra.mxu0 %v547
    %686 = vmatprep.subr.bf16.mxu0 %v550
    %687 = vmatpush1.bf16.msra.mxu0 %v549
    %688 = vmatprep.mubr.bf16.mxu0 %v218
    %689 = vmatmul.mubr.bf16.gmra.mrb[0].mxu0 %v217
    %v690 = vpop.f32.mrb[0].mxu0
    %v691 = vadd.f32 %v650, %v690
    %v692 = vpop.f32.mrb[0].mxu0
    %v693 = vadd.f32 %v652, %v692
    %v694 = vpop.f32.mrb[0].mxu0
    %v695 = vpop.f32.mrb[0].mxu0
    %696 = vdwg.mxu0
    %v699 = vcombine.low %v691, %v693
    %v701 = vunpack.c.l.s4 1983009808
    %v702 = vunpack.c.0.s8 %v701
    %v703 = vlaneseq
    %v704 = vshrl.u32 %v703, 7
    %v705 = vsub.s32 %v702, %v704
    %v706 = vrot.slane %v699, %v705
    %708 = vst [vmem:[#allocation2] sm:$0xf] %v706
    // Predicated region
    $region18: #{custom_vit_forward.1} parent=1 // pred_check
      _
    $region19: #{custom_vit_forward.1} parent=1 // pred_check_branch
      %710 = sbr.rel (0) target = $region21
    $region20: #{custom_vit_forward.1} parent=1 // pred_region
      %s712 = ssub.s32 64, 64
      %713 = vsyncadd [#allocation3], %s712
      %s715 = sshll.u32 [#allocation2], 4
      %s716 = int_to_ptr.vmem [resolvable:$true] %s715
      %718 = dma.vmem_to_hbm [thread:$0]  %s716, 64, %s4, [#allocation3]
    $region21: #{custom_vit_forward.1} parent=1 // pred_fallthru
      _
    // Predicated region
    $region22: #{custom_vit_forward.1} parent=1 // pred_check
      _
    $region23: #{custom_vit_forward.1} parent=1 // pred_check_branch
      %720 = sbr.rel (0) target = $region25
    $region24: #{custom_vit_forward.1} parent=1 // pred_region
      %721 = dma.done [#allocation3], 64
    $region25: #{custom_vit_forward.1} parent=1 // pred_fallthru
      _
    %722 = vsyncpa [#allocation3], 1

</llo_original>
